<compile_context>
chip_gen: v7x
topology: tpu7x:2x2x1
jax: 0.10.0
libtpu: 0.0.40
codegen_flags: <defaults>
</compile_context>

<pallas_src>
import numpy as np
import jax
import jax.numpy as jnp
from jax.experimental import pallas as pl
from jax.experimental.pallas import tpu as pltpu

# ---------------- configuration ----------------
T, B, D = 8, 4, 16      # seq_len, batch, input_dim
H = 32                  # goolstm_lay[0]
P = 32                  # goolstm_project[0]
BLOCK = 4               # block_size[0]
DROP = 0.0              # test mode: drop_mask is the scalar (1 - drop)
NGATES = 4              # gate order in the module: (f, i, o, c)


# ---------------- block-circulant index construction (parameter glue) ----------------
def block_indx(k, rc, cc):
    # exact replica of BCMGOOLSTM.block_indx
    rc = int((rc + k - 1) // k) * k
    cc = int((cc + k - 1) // k) * k
    i = np.arange(0, k, 1).reshape([1, k])
    j = np.arange(0, -k, -1).reshape([k, 1])
    indx = i + j
    indx = (indx + k) % k
    m = np.tile(indx, [int(rc // k), int(cc // k)])
    offset = np.arange(0, rc * cc)
    i = offset // cc // k
    j = offset % cc // k
    offset = (i * cc + j * k).reshape([rc, cc])
    return m + offset


def build_params(seed=0):
    key = jax.random.PRNGKey(seed)
    k_ih, k_hh, k_ym = jax.random.split(key, 3)

    target_c_ih = D * 4 * H // BLOCK
    target_c_hh = P * 4 * H // BLOCK

    # vector parameters (normal std=0.1, as in goolstm_orthinit branch)
    vector_ih = 0.1 * jax.random.normal(k_ih, (target_c_ih,), dtype=jnp.float32)
    vector_hh = 0.1 * jax.random.normal(k_hh, (target_c_hh,), dtype=jnp.float32)

    idx_ih = block_indx(BLOCK, D, 4 * H)
    idx_ih = (idx_ih + target_c_ih) % target_c_ih
    idx_ih = idx_ih[:D, :4 * H]

    idx_hh = block_indx(BLOCK, P, 4 * H)
    idx_hh = (idx_hh + target_c_hh) % target_c_hh
    idx_hh = idx_hh[:P, :4 * H]

    # F.linear(x, weight_ih) with weight_ih = gathered.view(D, 4H).t()
    # == x @ gathered.view(D, 4H); so pass the gathered (D, 4H) matrix directly.
    w_ih_t = vector_ih[jnp.asarray(idx_ih, dtype=jnp.int32)]     # (D, 4H)
    w_hh_t = vector_hh[jnp.asarray(idx_hh, dtype=jnp.int32)]     # (P, 4H)

    # bias_ih filled with 0.1 (no laynorm/batchnorm in this layer)
    b_ih = jnp.full((1, 4 * H), 0.1, dtype=jnp.float32)

    # wym: Linear(H, P, bias=False) with orthogonal init; yt = ht @ W.T -> pass W.T (H, P)
    a = jax.random.normal(k_ym, (P, H), dtype=jnp.float32)
    q, r = jnp.linalg.qr(a)
    wym_w = q * jnp.sign(jnp.diagonal(r))[None, :]               # (P, H), orthogonal
    w_ym_t = wym_w.T                                             # (H, P)

    return w_ih_t, b_ih, w_hh_t, w_ym_t


# ---------------- Pallas kernel ----------------
def goolstm_kernel(x_ref, wih_ref, wrec_ref, h_ref):
    # ---- phase 1 (off the recurrence critical path): hoisted input projection ----
    # ONE (T*B, D+1) @ (D+1, 4H) MXU op for all timesteps; the bias is the
    # appended 0.1-row hitting the ones-column, and the 0.5 pre-scale of the
    # f/i/o gate columns is already folded into the weights host-side.
    # w_all is (32, 128) f32 = 4 vregs and stays register-resident.
    w_all = jnp.dot(x_ref[...], wih_ref[...],
                    preferred_element_type=jnp.float32)          # (T*B, 4H)

    # Loop-invariant fused recurrent weight (w_ym_t @ w_hh_t, gate-prescaled): 4 vregs.
    wrec = wrec_ref[...]                                         # (H, 4H)

    def cell(g, ct_prev):
        # ONE full-width tanh per step covers all four gates:
        #   f/i/o lanes hold z/2  -> sigmoid(z) = 0.5*(1 + tanh(z/2))
        #   c lanes hold z        -> act      = tanh(z)
        tg = jnp.tanh(g)                                         # (B, 4H), single EUP pass
        tf = tg[:, 0 * H:1 * H]
        ti = tg[:, 1 * H:2 * H]
        to = tg[:, 2 * H:3 * H]
        tc = tg[:, 3 * H:4 * H]
        cand = (1.0 + ti) * tc
        if DROP != 0.0:            # test mode: scalar keep-prob; never traced when drop == 0
            cand = cand * (1.0 - DROP)
        ct_new = 0.5 * (cand + (1.0 + tf) * ct_prev)
        ht_new = 0.5 * (1.0 + to) * jnp.tanh(ct_new)
        return ct_new, ht_new

    # ---- phase 2: fully-unrolled sequential recurrence; state lives in vregs ----
    ct = jnp.zeros((B, H), jnp.float32)                          # h_init
    # k = 0: y_init == 0 so the recurrent matmul contributes nothing -> skip it.
    ct, ht = cell(w_all[0:B, :], ct)
    h_ref[0] = ht.astype(h_ref.dtype)
    for k in range(1, T):
        # One lane-dense (B,H)@(H,4H) matmul per step (all four gates fused) plus a
        # STATIC sublane slice of w_all -- no lane extracts before the MXU, no scratch.
        g = w_all[k * B:(k + 1) * B, :] + jnp.dot(
            ht, wrec, preferred_element_type=jnp.float32)
        ct, ht = cell(g, ct)
        h_ref[k] = ht.astype(h_ref.dtype)


def goolstm_forward(x, w_ih_t, b_ih, w_hh_t, w_ym_t):
    # ---- one-time parameter glue (would be precomputed per layer in a real model) ----
    # Fuse the wym output projection into the recurrent weight:
    #   u_out = (ht @ w_ym_t) @ w_hh_t == ht @ (w_ym_t @ w_hh_t);  yt is never materialized.
    w_rec = w_ym_t @ w_hh_t                                      # (H, 4H)

    # Fold the bias into the ih weight (extra 0.1-row + ones column on x) so the
    # kernel prologue is a single matmul: no bias input DMA, no broadcast-add.
    w_ih_aug = jnp.concatenate([w_ih_t, b_ih], axis=0)           # (D+1, 4H)

    # Pre-scale the f/i/o gate columns by 0.5 (gate order f,i,o,c) so the kernel can
    # use sigmoid(z) = 0.5*(1 + tanh(z/2)) with a single full-width tanh per step.
    gate_scale = jnp.concatenate(
        [jnp.full((3 * H,), 0.5, jnp.float32), jnp.ones((H,), jnp.float32)])
    w_ih_aug = w_ih_aug * gate_scale[None, :]
    w_rec = w_rec * gate_scale[None, :]

    # ---- per-call input prep: time-major flatten + ones column for the bias row ----
    x2 = x.reshape(T * B, D)
    x_aug = jnp.concatenate([x2, jnp.ones((T * B, 1), x2.dtype)], axis=1)   # (T*B, D+1)

    return pl.pallas_call(
        goolstm_kernel,
        out_shape=jax.ShapeDtypeStruct((T, B, H), jnp.float32),
        grid_spec=pltpu.PrefetchScalarGridSpec(
            num_scalar_prefetch=0,
            grid=(1,),
            in_specs=[
                pl.BlockSpec((T * B, D + 1), lambda i: (0, 0)),
                pl.BlockSpec((D + 1, NGATES * H), lambda i: (0, 0)),
                pl.BlockSpec((H, NGATES * H), lambda i: (0, 0)),
            ],
            out_specs=pl.BlockSpec((T, B, H), lambda i: (0, 0, 0)),
        ),
        compiler_params=pltpu.CompilerParams(
            dimension_semantics=("arbitrary",)),
    )(x_aug, w_ih_aug, w_rec)


# ---------------- pure-JAX reference (unfused, mirrors the PyTorch loop) ----------------
def goolstm_reference(x, w_ih_t, b_ih, w_hh_t, w_ym_t):
    w_out_all = jnp.einsum('tbd,dg->tbg', x, w_ih_t) + b_ih
    ct = jnp.zeros((B, H), jnp.float32)
    yt = jnp.zeros((B, P), jnp.float32)
    outs = []
    drop_keep = 1.0 - DROP
    for k in range(T):
        u = yt @ w_hh_t
        g = w_out_all[k] + u
        gf, gi, go, gc = jnp.split(g, 4, axis=1)
        it = jax.nn.sigmoid(gi)
        ft = jax.nn.sigmoid(gf)
        ot = jax.nn.sigmoid(go)
        ct = it * jnp.tanh(gc) * drop_keep + ft * ct
        ht = ot * jnp.tanh(ct)
        yt = ht @ w_ym_t
        outs.append(ht)
    return jnp.stack(outs)


if __name__ == "__main__":
    key = jax.random.PRNGKey(0)
    x = jax.random.normal(jax.random.fold_in(key, 42), (T, B, D), dtype=jnp.float32)
    w_ih_t, b_ih, w_hh_t, w_ym_t = build_params(seed=0)

    out = goolstm_forward(x, w_ih_t, b_ih, w_hh_t, w_ym_t)
    out = jax.block_until_ready(out)

    ref = goolstm_reference(x, w_ih_t, b_ih, w_hh_t, w_ym_t)
    ref = jax.block_until_ready(ref)

    assert out.shape == (T, B, H)
    np.testing.assert_allclose(np.asarray(out), np.asarray(ref), rtol=1e-4, atol=1e-5)
    print("KERNEL_OK")
</pallas_src>

<mosaic_0001>
module attributes {stable_mosaic.version = 11 : i64} {
  func.func @goolstm_kernel(%arg0: i32, %arg1: memref<32x17xf32, #tpu.memory_space<vmem>>, %arg2: memref<17x128xf32, #tpu.memory_space<vmem>>, %arg3: memref<32x128xf32, #tpu.memory_space<vmem>>, %arg4: memref<8x4x32xf32, #tpu.memory_space<vmem>>) attributes {dimension_semantics = [#tpu.dimension_semantics<arbitrary>], iteration_bounds = array<i64: 1>, scalar_prefetch = 0 : i64, scratch_operands = 0 : i64, tpu.core_type = #tpu.core_type<tc>, window_params = [{pipeline_mode = #tpu.pipeline_mode<synchronous>, transform_indices = @transform_0, window_bounds = array<i64: 32, 17>}, {pipeline_mode = #tpu.pipeline_mode<synchronous>, transform_indices = @transform_1, window_bounds = array<i64: 17, 128>}, {pipeline_mode = #tpu.pipeline_mode<synchronous>, transform_indices = @transform_2, window_bounds = array<i64: 32, 128>}, {pipeline_mode = #tpu.pipeline_mode<synchronous>, transform_indices = @transform_3, window_bounds = array<i64: 8, 4, 32>}]} {
    %c0 = arith.constant 0 : index
    %c0_0 = arith.constant 0 : index
    %0 = vector.load %arg1[%c0, %c0_0] : memref<32x17xf32, #tpu.memory_space<vmem>>, vector<32x17xf32>
    %c0_1 = arith.constant 0 : index
    %c0_2 = arith.constant 0 : index
    %1 = vector.load %arg2[%c0_1, %c0_2] : memref<17x128xf32, #tpu.memory_space<vmem>>, vector<17x128xf32>
    %cst = arith.constant dense<0.000000e+00> : vector<32x128xf32>
    %2 = tpu.matmul %0, %1, %cst {dimension_numbers = #tpu.dot_dimension_numbers<[1], [0], [0], [1], [0, 0, 1, 1], [], []>} : vector<32x17xf32>, vector<17x128xf32>, vector<32x128xf32> -> vector<32x128xf32>
    %c0_3 = arith.constant 0 : index
    %c0_4 = arith.constant 0 : index
    %3 = vector.load %arg3[%c0_3, %c0_4] : memref<32x128xf32, #tpu.memory_space<vmem>>, vector<32x128xf32>
    %cst_5 = arith.constant 0.000000e+00 : f32
    %4 = vector.broadcast %cst_5 : f32 to vector<4x32xf32>
    %5 = vector.extract_strided_slice %2 {offsets = [0, 0], sizes = [4, 128], strides = [1, 1]} : vector<32x128xf32> to vector<4x128xf32>
    %6 = math.tanh %5 : vector<4x128xf32>
    %7 = vector.extract_strided_slice %6 {offsets = [0, 0], sizes = [4, 32], strides = [1, 1]} : vector<4x128xf32> to vector<4x32xf32>
    %8 = vector.extract_strided_slice %6 {offsets = [0, 32], sizes = [4, 32], strides = [1, 1]} : vector<4x128xf32> to vector<4x32xf32>
    %9 = vector.extract_strided_slice %6 {offsets = [0, 64], sizes = [4, 32], strides = [1, 1]} : vector<4x128xf32> to vector<4x32xf32>
    %10 = vector.extract_strided_slice %6 {offsets = [0, 96], sizes = [4, 32], strides = [1, 1]} : vector<4x128xf32> to vector<4x32xf32>
    %cst_6 = arith.constant 1.000000e+00 : f32
    %11 = vector.broadcast %cst_6 : f32 to vector<4x32xf32>
    %12 = arith.addf %11, %8 : vector<4x32xf32>
    %13 = arith.mulf %12, %10 : vector<4x32xf32>
    %cst_7 = arith.constant 1.000000e+00 : f32
    %14 = vector.broadcast %cst_7 : f32 to vector<4x32xf32>
    %15 = arith.addf %14, %7 : vector<4x32xf32>
    %16 = arith.mulf %15, %4 : vector<4x32xf32>
    %17 = arith.addf %13, %16 : vector<4x32xf32>
    %cst_8 = arith.constant 5.000000e-01 : f32
    %18 = vector.broadcast %cst_8 : f32 to vector<4x32xf32>
    %19 = arith.mulf %18, %17 : vector<4x32xf32>
    %cst_9 = arith.constant 1.000000e+00 : f32
    %20 = vector.broadcast %cst_9 : f32 to vector<4x32xf32>
    %21 = arith.addf %20, %9 : vector<4x32xf32>
    %cst_10 = arith.constant 5.000000e-01 : f32
    %22 = vector.broadcast %cst_10 : f32 to vector<4x32xf32>
    %23 = arith.mulf %22, %21 : vector<4x32xf32>
    %24 = math.tanh %19 : vector<4x32xf32>
    %25 = arith.mulf %23, %24 : vector<4x32xf32>
    %c0_11 = arith.constant 0 : index
    %c0_12 = arith.constant 0 : index
    %c0_13 = arith.constant 0 : index
    %26 = vector.load %arg4[%c0_11, %c0_12, %c0_13] : memref<8x4x32xf32, #tpu.memory_space<vmem>>, vector<1x4x32xf32>
    %27 = vector.shape_cast %26 : vector<1x4x32xf32> to vector<4x32xf32>
    %28 = vector.shape_cast %25 : vector<4x32xf32> to vector<1x4x32xf32>
    tpu.vector_store %arg4[%c0_11, %c0_12, %c0_13], %28 {strides = array<i32>} : memref<8x4x32xf32, #tpu.memory_space<vmem>>, vector<1x4x32xf32>,
    %29 = vector.extract_strided_slice %2 {offsets = [4, 0], sizes = [4, 128], strides = [1, 1]} : vector<32x128xf32> to vector<4x128xf32>
    %cst_14 = arith.constant dense<0.000000e+00> : vector<4x128xf32>
    %30 = tpu.matmul %25, %3, %cst_14 {dimension_numbers = #tpu.dot_dimension_numbers<[1], [0], [0], [1], [0, 0, 1, 1], [], []>} : vector<4x32xf32>, vector<32x128xf32>, vector<4x128xf32> -> vector<4x128xf32>
    %31 = arith.addf %29, %30 : vector<4x128xf32>
    %32 = math.tanh %31 : vector<4x128xf32>
    %33 = vector.extract_strided_slice %32 {offsets = [0, 0], sizes = [4, 32], strides = [1, 1]} : vector<4x128xf32> to vector<4x32xf32>
    %34 = vector.extract_strided_slice %32 {offsets = [0, 32], sizes = [4, 32], strides = [1, 1]} : vector<4x128xf32> to vector<4x32xf32>
    %35 = vector.extract_strided_slice %32 {offsets = [0, 64], sizes = [4, 32], strides = [1, 1]} : vector<4x128xf32> to vector<4x32xf32>
    %36 = vector.extract_strided_slice %32 {offsets = [0, 96], sizes = [4, 32], strides = [1, 1]} : vector<4x128xf32> to vector<4x32xf32>
    %cst_15 = arith.constant 1.000000e+00 : f32
    %37 = vector.broadcast %cst_15 : f32 to vector<4x32xf32>
    %38 = arith.addf %37, %34 : vector<4x32xf32>
    %39 = arith.mulf %38, %36 : vector<4x32xf32>
    %cst_16 = arith.constant 1.000000e+00 : f32
    %40 = vector.broadcast %cst_16 : f32 to vector<4x32xf32>
    %41 = arith.addf %40, %33 : vector<4x32xf32>
    %42 = arith.mulf %41, %19 : vector<4x32xf32>
    %43 = arith.addf %39, %42 : vector<4x32xf32>
    %cst_17 = arith.constant 5.000000e-01 : f32
    %44 = vector.broadcast %cst_17 : f32 to vector<4x32xf32>
    %45 = arith.mulf %44, %43 : vector<4x32xf32>
    %cst_18 = arith.constant 1.000000e+00 : f32
    %46 = vector.broadcast %cst_18 : f32 to vector<4x32xf32>
    %47 = arith.addf %46, %35 : vector<4x32xf32>
    %cst_19 = arith.constant 5.000000e-01 : f32
    %48 = vector.broadcast %cst_19 : f32 to vector<4x32xf32>
    %49 = arith.mulf %48, %47 : vector<4x32xf32>
    %50 = math.tanh %45 : vector<4x32xf32>
    %51 = arith.mulf %49, %50 : vector<4x32xf32>
    %c1 = arith.constant 1 : index
    %c0_20 = arith.constant 0 : index
    %c0_21 = arith.constant 0 : index
    %52 = vector.load %arg4[%c1, %c0_20, %c0_21] : memref<8x4x32xf32, #tpu.memory_space<vmem>>, vector<1x4x32xf32>
    %53 = vector.shape_cast %52 : vector<1x4x32xf32> to vector<4x32xf32>
    %54 = vector.shape_cast %51 : vector<4x32xf32> to vector<1x4x32xf32>
    tpu.vector_store %arg4[%c1, %c0_20, %c0_21], %54 {strides = array<i32>} : memref<8x4x32xf32, #tpu.memory_space<vmem>>, vector<1x4x32xf32>,
    %55 = vector.extract_strided_slice %2 {offsets = [8, 0], sizes = [4, 128], strides = [1, 1]} : vector<32x128xf32> to vector<4x128xf32>
    %cst_22 = arith.constant dense<0.000000e+00> : vector<4x128xf32>
    %56 = tpu.matmul %51, %3, %cst_22 {dimension_numbers = #tpu.dot_dimension_numbers<[1], [0], [0], [1], [0, 0, 1, 1], [], []>} : vector<4x32xf32>, vector<32x128xf32>, vector<4x128xf32> -> vector<4x128xf32>
    %57 = arith.addf %55, %56 : vector<4x128xf32>
    %58 = math.tanh %57 : vector<4x128xf32>
    %59 = vector.extract_strided_slice %58 {offsets = [0, 0], sizes = [4, 32], strides = [1, 1]} : vector<4x128xf32> to vector<4x32xf32>
    %60 = vector.extract_strided_slice %58 {offsets = [0, 32], sizes = [4, 32], strides = [1, 1]} : vector<4x128xf32> to vector<4x32xf32>
    %61 = vector.extract_strided_slice %58 {offsets = [0, 64], sizes = [4, 32], strides = [1, 1]} : vector<4x128xf32> to vector<4x32xf32>
    %62 = vector.extract_strided_slice %58 {offsets = [0, 96], sizes = [4, 32], strides = [1, 1]} : vector<4x128xf32> to vector<4x32xf32>
    %cst_23 = arith.constant 1.000000e+00 : f32
    %63 = vector.broadcast %cst_23 : f32 to vector<4x32xf32>
    %64 = arith.addf %63, %60 : vector<4x32xf32>
    %65 = arith.mulf %64, %62 : vector<4x32xf32>
    %cst_24 = arith.constant 1.000000e+00 : f32
    %66 = vector.broadcast %cst_24 : f32 to vector<4x32xf32>
    %67 = arith.addf %66, %59 : vector<4x32xf32>
    %68 = arith.mulf %67, %45 : vector<4x32xf32>
    %69 = arith.addf %65, %68 : vector<4x32xf32>
    %cst_25 = arith.constant 5.000000e-01 : f32
    %70 = vector.broadcast %cst_25 : f32 to vector<4x32xf32>
    %71 = arith.mulf %70, %69 : vector<4x32xf32>
    %cst_26 = arith.constant 1.000000e+00 : f32
    %72 = vector.broadcast %cst_26 : f32 to vector<4x32xf32>
    %73 = arith.addf %72, %61 : vector<4x32xf32>
    %cst_27 = arith.constant 5.000000e-01 : f32
    %74 = vector.broadcast %cst_27 : f32 to vector<4x32xf32>
    %75 = arith.mulf %74, %73 : vector<4x32xf32>
    %76 = math.tanh %71 : vector<4x32xf32>
    %77 = arith.mulf %75, %76 : vector<4x32xf32>
    %c2 = arith.constant 2 : index
    %c0_28 = arith.constant 0 : index
    %c0_29 = arith.constant 0 : index
    %78 = vector.load %arg4[%c2, %c0_28, %c0_29] : memref<8x4x32xf32, #tpu.memory_space<vmem>>, vector<1x4x32xf32>
    %79 = vector.shape_cast %78 : vector<1x4x32xf32> to vector<4x32xf32>
    %80 = vector.shape_cast %77 : vector<4x32xf32> to vector<1x4x32xf32>
    tpu.vector_store %arg4[%c2, %c0_28, %c0_29], %80 {strides = array<i32>} : memref<8x4x32xf32, #tpu.memory_space<vmem>>, vector<1x4x32xf32>,
    %81 = vector.extract_strided_slice %2 {offsets = [12, 0], sizes = [4, 128], strides = [1, 1]} : vector<32x128xf32> to vector<4x128xf32>
    %cst_30 = arith.constant dense<0.000000e+00> : vector<4x128xf32>
    %82 = tpu.matmul %77, %3, %cst_30 {dimension_numbers = #tpu.dot_dimension_numbers<[1], [0], [0], [1], [0, 0, 1, 1], [], []>} : vector<4x32xf32>, vector<32x128xf32>, vector<4x128xf32> -> vector<4x128xf32>
    %83 = arith.addf %81, %82 : vector<4x128xf32>
    %84 = math.tanh %83 : vector<4x128xf32>
    %85 = vector.extract_strided_slice %84 {offsets = [0, 0], sizes = [4, 32], strides = [1, 1]} : vector<4x128xf32> to vector<4x32xf32>
    %86 = vector.extract_strided_slice %84 {offsets = [0, 32], sizes = [4, 32], strides = [1, 1]} : vector<4x128xf32> to vector<4x32xf32>
    %87 = vector.extract_strided_slice %84 {offsets = [0, 64], sizes = [4, 32], strides = [1, 1]} : vector<4x128xf32> to vector<4x32xf32>
    %88 = vector.extract_strided_slice %84 {offsets = [0, 96], sizes = [4, 32], strides = [1, 1]} : vector<4x128xf32> to vector<4x32xf32>
    %cst_31 = arith.constant 1.000000e+00 : f32
    %89 = vector.broadcast %cst_31 : f32 to vector<4x32xf32>
    %90 = arith.addf %89, %86 : vector<4x32xf32>
    %91 = arith.mulf %90, %88 : vector<4x32xf32>
    %cst_32 = arith.constant 1.000000e+00 : f32
    %92 = vector.broadcast %cst_32 : f32 to vector<4x32xf32>
    %93 = arith.addf %92, %85 : vector<4x32xf32>
    %94 = arith.mulf %93, %71 : vector<4x32xf32>
    %95 = arith.addf %91, %94 : vector<4x32xf32>
    %cst_33 = arith.constant 5.000000e-01 : f32
    %96 = vector.broadcast %cst_33 : f32 to vector<4x32xf32>
    %97 = arith.mulf %96, %95 : vector<4x32xf32>
    %cst_34 = arith.constant 1.000000e+00 : f32
    %98 = vector.broadcast %cst_34 : f32 to vector<4x32xf32>
    %99 = arith.addf %98, %87 : vector<4x32xf32>
    %cst_35 = arith.constant 5.000000e-01 : f32
    %100 = vector.broadcast %cst_35 : f32 to vector<4x32xf32>
    %101 = arith.mulf %100, %99 : vector<4x32xf32>
    %102 = math.tanh %97 : vector<4x32xf32>
    %103 = arith.mulf %101, %102 : vector<4x32xf32>
    %c3 = arith.constant 3 : index
    %c0_36 = arith.constant 0 : index
    %c0_37 = arith.constant 0 : index
    %104 = vector.load %arg4[%c3, %c0_36, %c0_37] : memref<8x4x32xf32, #tpu.memory_space<vmem>>, vector<1x4x32xf32>
    %105 = vector.shape_cast %104 : vector<1x4x32xf32> to vector<4x32xf32>
    %106 = vector.shape_cast %103 : vector<4x32xf32> to vector<1x4x32xf32>
    tpu.vector_store %arg4[%c3, %c0_36, %c0_37], %106 {strides = array<i32>} : memref<8x4x32xf32, #tpu.memory_space<vmem>>, vector<1x4x32xf32>,
    %107 = vector.extract_strided_slice %2 {offsets = [16, 0], sizes = [4, 128], strides = [1, 1]} : vector<32x128xf32> to vector<4x128xf32>
    %cst_38 = arith.constant dense<0.000000e+00> : vector<4x128xf32>
    %108 = tpu.matmul %103, %3, %cst_38 {dimension_numbers = #tpu.dot_dimension_numbers<[1], [0], [0], [1], [0, 0, 1, 1], [], []>} : vector<4x32xf32>, vector<32x128xf32>, vector<4x128xf32> -> vector<4x128xf32>
    %109 = arith.addf %107, %108 : vector<4x128xf32>
    %110 = math.tanh %109 : vector<4x128xf32>
    %111 = vector.extract_strided_slice %110 {offsets = [0, 0], sizes = [4, 32], strides = [1, 1]} : vector<4x128xf32> to vector<4x32xf32>
    %112 = vector.extract_strided_slice %110 {offsets = [0, 32], sizes = [4, 32], strides = [1, 1]} : vector<4x128xf32> to vector<4x32xf32>
    %113 = vector.extract_strided_slice %110 {offsets = [0, 64], sizes = [4, 32], strides = [1, 1]} : vector<4x128xf32> to vector<4x32xf32>
    %114 = vector.extract_strided_slice %110 {offsets = [0, 96], sizes = [4, 32], strides = [1, 1]} : vector<4x128xf32> to vector<4x32xf32>
    %cst_39 = arith.constant 1.000000e+00 : f32
    %115 = vector.broadcast %cst_39 : f32 to vector<4x32xf32>
    %116 = arith.addf %115, %112 : vector<4x32xf32>
    %117 = arith.mulf %116, %114 : vector<4x32xf32>
    %cst_40 = arith.constant 1.000000e+00 : f32
    %118 = vector.broadcast %cst_40 : f32 to vector<4x32xf32>
    %119 = arith.addf %118, %111 : vector<4x32xf32>
    %120 = arith.mulf %119, %97 : vector<4x32xf32>
    %121 = arith.addf %117, %120 : vector<4x32xf32>
    %cst_41 = arith.constant 5.000000e-01 : f32
    %122 = vector.broadcast %cst_41 : f32 to vector<4x32xf32>
    %123 = arith.mulf %122, %121 : vector<4x32xf32>
    %cst_42 = arith.constant 1.000000e+00 : f32
    %124 = vector.broadcast %cst_42 : f32 to vector<4x32xf32>
    %125 = arith.addf %124, %113 : vector<4x32xf32>
    %cst_43 = arith.constant 5.000000e-01 : f32
    %126 = vector.broadcast %cst_43 : f32 to vector<4x32xf32>
    %127 = arith.mulf %126, %125 : vector<4x32xf32>
    %128 = math.tanh %123 : vector<4x32xf32>
    %129 = arith.mulf %127, %128 : vector<4x32xf32>
    %c4 = arith.constant 4 : index
    %c0_44 = arith.constant 0 : index
    %c0_45 = arith.constant 0 : index
    %130 = vector.load %arg4[%c4, %c0_44, %c0_45] : memref<8x4x32xf32, #tpu.memory_space<vmem>>, vector<1x4x32xf32>
    %131 = vector.shape_cast %130 : vector<1x4x32xf32> to vector<4x32xf32>
    %132 = vector.shape_cast %129 : vector<4x32xf32> to vector<1x4x32xf32>
    tpu.vector_store %arg4[%c4, %c0_44, %c0_45], %132 {strides = array<i32>} : memref<8x4x32xf32, #tpu.memory_space<vmem>>, vector<1x4x32xf32>,
    %133 = vector.extract_strided_slice %2 {offsets = [20, 0], sizes = [4, 128], strides = [1, 1]} : vector<32x128xf32> to vector<4x128xf32>
    %cst_46 = arith.constant dense<0.000000e+00> : vector<4x128xf32>
    %134 = tpu.matmul %129, %3, %cst_46 {dimension_numbers = #tpu.dot_dimension_numbers<[1], [0], [0], [1], [0, 0, 1, 1], [], []>} : vector<4x32xf32>, vector<32x128xf32>, vector<4x128xf32> -> vector<4x128xf32>
    %135 = arith.addf %133, %134 : vector<4x128xf32>
    %136 = math.tanh %135 : vector<4x128xf32>
    %137 = vector.extract_strided_slice %136 {offsets = [0, 0], sizes = [4, 32], strides = [1, 1]} : vector<4x128xf32> to vector<4x32xf32>
    %138 = vector.extract_strided_slice %136 {offsets = [0, 32], sizes = [4, 32], strides = [1, 1]} : vector<4x128xf32> to vector<4x32xf32>
    %139 = vector.extract_strided_slice %136 {offsets = [0, 64], sizes = [4, 32], strides = [1, 1]} : vector<4x128xf32> to vector<4x32xf32>
    %140 = vector.extract_strided_slice %136 {offsets = [0, 96], sizes = [4, 32], strides = [1, 1]} : vector<4x128xf32> to vector<4x32xf32>
    %cst_47 = arith.constant 1.000000e+00 : f32
    %141 = vector.broadcast %cst_47 : f32 to vector<4x32xf32>
    %142 = arith.addf %141, %138 : vector<4x32xf32>
    %143 = arith.mulf %142, %140 : vector<4x32xf32>
    %cst_48 = arith.constant 1.000000e+00 : f32
    %144 = vector.broadcast %cst_48 : f32 to vector<4x32xf32>
    %145 = arith.addf %144, %137 : vector<4x32xf32>
    %146 = arith.mulf %145, %123 : vector<4x32xf32>
    %147 = arith.addf %143, %146 : vector<4x32xf32>
    %cst_49 = arith.constant 5.000000e-01 : f32
    %148 = vector.broadcast %cst_49 : f32 to vector<4x32xf32>
    %149 = arith.mulf %148, %147 : vector<4x32xf32>
    %cst_50 = arith.constant 1.000000e+00 : f32
    %150 = vector.broadcast %cst_50 : f32 to vector<4x32xf32>
    %151 = arith.addf %150, %139 : vector<4x32xf32>
    %cst_51 = arith.constant 5.000000e-01 : f32
    %152 = vector.broadcast %cst_51 : f32 to vector<4x32xf32>
    %153 = arith.mulf %152, %151 : vector<4x32xf32>
    %154 = math.tanh %149 : vector<4x32xf32>
    %155 = arith.mulf %153, %154 : vector<4x32xf32>
    %c5 = arith.constant 5 : index
    %c0_52 = arith.constant 0 : index
    %c0_53 = arith.constant 0 : index
    %156 = vector.load %arg4[%c5, %c0_52, %c0_53] : memref<8x4x32xf32, #tpu.memory_space<vmem>>, vector<1x4x32xf32>
    %157 = vector.shape_cast %156 : vector<1x4x32xf32> to vector<4x32xf32>
    %158 = vector.shape_cast %155 : vector<4x32xf32> to vector<1x4x32xf32>
    tpu.vector_store %arg4[%c5, %c0_52, %c0_53], %158 {strides = array<i32>} : memref<8x4x32xf32, #tpu.memory_space<vmem>>, vector<1x4x32xf32>,
    %159 = vector.extract_strided_slice %2 {offsets = [24, 0], sizes = [4, 128], strides = [1, 1]} : vector<32x128xf32> to vector<4x128xf32>
    %cst_54 = arith.constant dense<0.000000e+00> : vector<4x128xf32>
    %160 = tpu.matmul %155, %3, %cst_54 {dimension_numbers = #tpu.dot_dimension_numbers<[1], [0], [0], [1], [0, 0, 1, 1], [], []>} : vector<4x32xf32>, vector<32x128xf32>, vector<4x128xf32> -> vector<4x128xf32>
    %161 = arith.addf %159, %160 : vector<4x128xf32>
    %162 = math.tanh %161 : vector<4x128xf32>
    %163 = vector.extract_strided_slice %162 {offsets = [0, 0], sizes = [4, 32], strides = [1, 1]} : vector<4x128xf32> to vector<4x32xf32>
    %164 = vector.extract_strided_slice %162 {offsets = [0, 32], sizes = [4, 32], strides = [1, 1]} : vector<4x128xf32> to vector<4x32xf32>
    %165 = vector.extract_strided_slice %162 {offsets = [0, 64], sizes = [4, 32], strides = [1, 1]} : vector<4x128xf32> to vector<4x32xf32>
    %166 = vector.extract_strided_slice %162 {offsets = [0, 96], sizes = [4, 32], strides = [1, 1]} : vector<4x128xf32> to vector<4x32xf32>
    %cst_55 = arith.constant 1.000000e+00 : f32
    %167 = vector.broadcast %cst_55 : f32 to vector<4x32xf32>
    %168 = arith.addf %167, %164 : vector<4x32xf32>
    %169 = arith.mulf %168, %166 : vector<4x32xf32>
    %cst_56 = arith.constant 1.000000e+00 : f32
    %170 = vector.broadcast %cst_56 : f32 to vector<4x32xf32>
    %171 = arith.addf %170, %163 : vector<4x32xf32>
    %172 = arith.mulf %171, %149 : vector<4x32xf32>
    %173 = arith.addf %169, %172 : vector<4x32xf32>
    %cst_57 = arith.constant 5.000000e-01 : f32
    %174 = vector.broadcast %cst_57 : f32 to vector<4x32xf32>
    %175 = arith.mulf %174, %173 : vector<4x32xf32>
    %cst_58 = arith.constant 1.000000e+00 : f32
    %176 = vector.broadcast %cst_58 : f32 to vector<4x32xf32>
    %177 = arith.addf %176, %165 : vector<4x32xf32>
    %cst_59 = arith.constant 5.000000e-01 : f32
    %178 = vector.broadcast %cst_59 : f32 to vector<4x32xf32>
    %179 = arith.mulf %178, %177 : vector<4x32xf32>
    %180 = math.tanh %175 : vector<4x32xf32>
    %181 = arith.mulf %179, %180 : vector<4x32xf32>
    %c6 = arith.constant 6 : index
    %c0_60 = arith.constant 0 : index
    %c0_61 = arith.constant 0 : index
    %182 = vector.load %arg4[%c6, %c0_60, %c0_61] : memref<8x4x32xf32, #tpu.memory_space<vmem>>, vector<1x4x32xf32>
    %183 = vector.shape_cast %182 : vector<1x4x32xf32> to vector<4x32xf32>
    %184 = vector.shape_cast %181 : vector<4x32xf32> to vector<1x4x32xf32>
    tpu.vector_store %arg4[%c6, %c0_60, %c0_61], %184 {strides = array<i32>} : memref<8x4x32xf32, #tpu.memory_space<vmem>>, vector<1x4x32xf32>,
    %185 = vector.extract_strided_slice %2 {offsets = [28, 0], sizes = [4, 128], strides = [1, 1]} : vector<32x128xf32> to vector<4x128xf32>
    %cst_62 = arith.constant dense<0.000000e+00> : vector<4x128xf32>
    %186 = tpu.matmul %181, %3, %cst_62 {dimension_numbers = #tpu.dot_dimension_numbers<[1], [0], [0], [1], [0, 0, 1, 1], [], []>} : vector<4x32xf32>, vector<32x128xf32>, vector<4x128xf32> -> vector<4x128xf32>
    %187 = arith.addf %185, %186 : vector<4x128xf32>
    %188 = math.tanh %187 : vector<4x128xf32>
    %189 = vector.extract_strided_slice %188 {offsets = [0, 0], sizes = [4, 32], strides = [1, 1]} : vector<4x128xf32> to vector<4x32xf32>
    %190 = vector.extract_strided_slice %188 {offsets = [0, 32], sizes = [4, 32], strides = [1, 1]} : vector<4x128xf32> to vector<4x32xf32>
    %191 = vector.extract_strided_slice %188 {offsets = [0, 64], sizes = [4, 32], strides = [1, 1]} : vector<4x128xf32> to vector<4x32xf32>
    %192 = vector.extract_strided_slice %188 {offsets = [0, 96], sizes = [4, 32], strides = [1, 1]} : vector<4x128xf32> to vector<4x32xf32>
    %cst_63 = arith.constant 1.000000e+00 : f32
    %193 = vector.broadcast %cst_63 : f32 to vector<4x32xf32>
    %194 = arith.addf %193, %190 : vector<4x32xf32>
    %195 = arith.mulf %194, %192 : vector<4x32xf32>
    %cst_64 = arith.constant 1.000000e+00 : f32
    %196 = vector.broadcast %cst_64 : f32 to vector<4x32xf32>
    %197 = arith.addf %196, %189 : vector<4x32xf32>
    %198 = arith.mulf %197, %175 : vector<4x32xf32>
    %199 = arith.addf %195, %198 : vector<4x32xf32>
    %cst_65 = arith.constant 5.000000e-01 : f32
    %200 = vector.broadcast %cst_65 : f32 to vector<4x32xf32>
    %201 = arith.mulf %200, %199 : vector<4x32xf32>
    %cst_66 = arith.constant 1.000000e+00 : f32
    %202 = vector.broadcast %cst_66 : f32 to vector<4x32xf32>
    %203 = arith.addf %202, %191 : vector<4x32xf32>
    %cst_67 = arith.constant 5.000000e-01 : f32
    %204 = vector.broadcast %cst_67 : f32 to vector<4x32xf32>
    %205 = arith.mulf %204, %203 : vector<4x32xf32>
    %206 = math.tanh %201 : vector<4x32xf32>
    %207 = arith.mulf %205, %206 : vector<4x32xf32>
    %c7 = arith.constant 7 : index
    %c0_68 = arith.constant 0 : index
    %c0_69 = arith.constant 0 : index
    %208 = vector.load %arg4[%c7, %c0_68, %c0_69] : memref<8x4x32xf32, #tpu.memory_space<vmem>>, vector<1x4x32xf32>
    %209 = vector.shape_cast %208 : vector<1x4x32xf32> to vector<4x32xf32>
    %210 = vector.shape_cast %207 : vector<4x32xf32> to vector<1x4x32xf32>
    tpu.vector_store %arg4[%c7, %c0_68, %c0_69], %210 {strides = array<i32>} : memref<8x4x32xf32, #tpu.memory_space<vmem>>, vector<1x4x32xf32>,
    return
  }
  func.func @transform_0(%arg0: i32) -> (i32, i32) {
    %c0_i32 = arith.constant 0 : i32
    %c0_i32_0 = arith.constant 0 : i32
    %c0_i32_1 = arith.constant 0 : i32
    return %c0_i32, %c0_i32_0 : i32, i32
  }
  func.func @transform_1(%arg0: i32) -> (i32, i32) {
    %c0_i32 = arith.constant 0 : i32
    %c0_i32_0 = arith.constant 0 : i32
    %c0_i32_1 = arith.constant 0 : i32
    return %c0_i32, %c0_i32_0 : i32, i32
  }
  func.func @transform_2(%arg0: i32) -> (i32, i32) {
    %c0_i32 = arith.constant 0 : i32
    %c0_i32_0 = arith.constant 0 : i32
    %c0_i32_1 = arith.constant 0 : i32
    return %c0_i32, %c0_i32_0 : i32, i32
  }
  func.func @transform_3(%arg0: i32) -> (i32, i32, i32) {
    %c0_i32 = arith.constant 0 : i32
    %c0_i32_0 = arith.constant 0 : i32
    %c0_i32_1 = arith.constant 0 : i32
    %c0_i32_2 = arith.constant 0 : i32
    return %c0_i32, %c0_i32_0, %c0_i32_1 : i32, i32, i32
  }
}

</mosaic_0001>

<llo_original>
// kernel: tpu_custom_call.1
$region0: #{tpu_custom_call.1}
  #allocation0 [shape = 'u32[]', space=smem, size = 0x4, offset = 0x4, fixed_abs, tag = 'smem constant byte address 0x4 - core index']
  #allocation1 [shape = 'u32[144,128]{1,0:T(1,128)}', space=vmem, size = 0x12000, scoped, tag = 'internal scratch']
  %s0 = inlined_call_operand.vmem [shape: f32[32,17], index: 0, kind: input, shape index: {}]
  %s1 = inlined_call_operand.vmem [shape: f32[17,128], index: 1, kind: input, shape index: {}]
  %s2 = inlined_call_operand.vmem [shape: f32[32,128], index: 2, kind: input, shape index: {}]
  %s3 = inlined_call_operand.hbm [shape: f32[8,4,32], index: 3, kind: output, shape index: {}]
  %s4 = sld [smem:[#allocation0]]
  $region22: #{tpu_custom_call.1} parent=0
    _
  %s6 = ssub.s32 1, %s4
  %s7 = scalar_select 0, %s6, %s4
  $region1: #{tpu_custom_call.1} parent=0
    #allocation2 [shape = 'u8[16384]{0}', space=vmem, size = 0x4000, scoped, tag = 'output window, operand 0, single buffered']
    #allocation3 [shape = 's32[1]{0}', space=sflag, size = 0x4, scoped, tag = 'scoped memory for tpu_custom_call.1']
    %8 = vsyncpa [#allocation3], 0
    // Predicated region
    $region2: #{tpu_custom_call.1} parent=1 // pred_check
      _
    $region3: #{tpu_custom_call.1} parent=1 // pred_check_branch
      %10 = sbr.rel (0) target = $region5
    $region4: #{tpu_custom_call.1} parent=1 // pred_region
      _
    $region5: #{tpu_custom_call.1} parent=1 // pred_fallthru
      _
    // Predicated region
    $region6: #{tpu_custom_call.1} parent=1 // pred_check
      _
    $region7: #{tpu_custom_call.1} parent=1 // pred_check_branch
      %12 = sbr.rel (0) target = $region9
    $region8: #{tpu_custom_call.1} parent=1 // pred_region
      _
    $region9: #{tpu_custom_call.1} parent=1 // pred_fallthru
      _
    // Predicated region
    $region10: #{tpu_custom_call.1} parent=1 // pred_check
      _
    $region11: #{tpu_custom_call.1} parent=1 // pred_check_branch
      %14 = sbr.rel (0) target = $region13
    $region12: #{tpu_custom_call.1} parent=1 // pred_region
      _
    $region13: #{tpu_custom_call.1} parent=1 // pred_fallthru
      _
    %v15 = vld [vmem:[%s0] sm:$0xff]
    %v16 = vld [vmem:[%s0 + $0x8] sm:$0xff]
    %v17 = vld [vmem:[%s0 + $0x10] sm:$0xff]
    %v18 = vld [vmem:[%s0 + $0x18] sm:$0xff]
    %v19 = vld [vmem:[%s1] sm:$0xff]
    %v20 = vld [vmem:[%s1 + $0x8] sm:$0xff]
    %v21 = vld [vmem:[%s1 + $0x10] sm:$0x1]
    %vm22 = vcmask 138240
    %v24 = vsel %vm22, %v15, 0
    %v27 = vsel %vm22, %v16, 0
    %v30 = vsel %vm22, %v17, 0
    %v33 = vsel %vm22, %v18, 0
    %vm35 = vcmask 1040384
    %v37 = vsel %vm35, %v21, 0
    %39 = vmatprep.subr.mxu0 0.0
    %40 = vmatpush1.msra.mxu0 %v19
    %41 = vmatprep.subr.mxu0 0.0
    %42 = vmatpush1.msra.mxu0 %v20
    %43 = vmatprep.subr.mxu0 0.0
    %44 = vmatpush1.msra.mxu0 %v37
    %45 = vmatprep.subr.mxu0 0.0
    %46 = vmatpush1.msra.mxu0 0.0
    %47 = vmatprep.subr.mxu0 0.0
    %48 = vmatpush1.msra.mxu0 0.0
    %49 = vmatprep.subr.mxu0 0.0
    %50 = vmatpush1.msra.mxu0 0.0
    %51 = vmatprep.subr.mxu0 0.0
    %52 = vmatpush1.msra.mxu0 0.0
    %53 = vmatprep.subr.mxu0 0.0
    %54 = vmatpush1.msra.mxu0 0.0
    %55 = vmatprep.subr.mxu0 0.0
    %56 = vmatpush1.msra.mxu0 0.0
    %57 = vmatprep.subr.mxu0 0.0
    %58 = vmatpush1.msra.mxu0 0.0
    %59 = vmatprep.subr.mxu0 0.0
    %60 = vmatpush1.msra.mxu0 0.0
    %61 = vmatprep.subr.mxu0 0.0
    %62 = vmatpush1.msra.mxu0 0.0
    %63 = vmatprep.subr.mxu0 0.0
    %64 = vmatpush1.msra.mxu0 0.0
    %65 = vmatprep.subr.mxu0 0.0
    %66 = vmatpush1.msra.mxu0 0.0
    %67 = vmatprep.subr.mxu0 0.0
    %68 = vmatpush1.msra.mxu0 0.0
    %69 = vmatprep.subr.mxu0 0.0
    %70 = vmatpush1.msra.mxu0 0.0
    %71 = vmatprep.subr.mxu0 0.0
    %72 = vmatpush1.msra.mxu0 0.0
    %73 = vmatprep.subr.mxu0 0.0
    %74 = vmatpush1.msra.mxu0 0.0
    %75 = vmatprep.subr.mxu0 0.0
    %76 = vmatpush1.msra.mxu0 0.0
    %77 = vmatprep.subr.mxu0 0.0
    %78 = vmatpush1.msra.mxu0 0.0
    %79 = vmatprep.subr.mxu0 0.0
    %80 = vmatpush1.msra.mxu0 0.0
    %81 = vmatprep.subr.mxu0 0.0
    %82 = vmatpush1.msra.mxu0 0.0
    %83 = vmatprep.subr.mxu0 0.0
    %84 = vmatpush1.msra.mxu0 0.0
    %85 = vmatprep.subr.mxu0 0.0
    %86 = vmatpush1.msra.mxu0 0.0
    %87 = vmatprep.subr.mxu0 0.0
    %88 = vmatpush1.msra.mxu0 0.0
    %89 = vmatprep.subr.mxu0 0.0
    %90 = vmatpush1.msra.mxu0 0.0
    %91 = vmatprep.subr.mxu0 0.0
    %92 = vmatpush1.msra.mxu0 0.0
    %93 = vmatprep.subr.mxu0 0.0
    %94 = vmatpush1.msra.mxu0 0.0
    %95 = vmatprep.subr.mxu0 0.0
    %96 = vmatpush1.msra.mxu0 0.0
    %97 = vmatprep.subr.mxu0 0.0
    %98 = vmatpush1.msra.mxu0 0.0
    %99 = vmatprep.subr.mxu0 0.0
    %100 = vmatpush1.msra.mxu0 0.0
    %101 = vmatprep.subr.mxu0 0.0
    %102 = vmatpush1.msra.mxu0 0.0
    %103 = vmatprep.mubr.f32.mxu0 0.0
    %104 = vmatmul.mubr.f32.gmra.mrb[0].mxu0 %v24
    %v105 = vpop.f32.mrb[0].mxu0
    %v106 = vadd.f32 0.0, %v105
    %v107 = vpop.f32.mrb[0].mxu0
    %108 = vmatprep.mubr.f32.mxu0 0.0
    %109 = vmatmul.mubr.f32.gmra.mrb[0].mxu0 %v27
    %v110 = vpop.f32.mrb[0].mxu0
    %v111 = vadd.f32 0.0, %v110
    %v112 = vpop.f32.mrb[0].mxu0
    %113 = vmatprep.mubr.f32.mxu0 0.0
    %114 = vmatmul.mubr.f32.gmra.mrb[0].mxu0 %v30
    %v115 = vpop.f32.mrb[0].mxu0
    %v116 = vadd.f32 0.0, %v115
    %v117 = vpop.f32.mrb[0].mxu0
    %118 = vmatprep.mubr.f32.mxu0 0.0
    %119 = vmatmul.mubr.f32.gmra.mrb[0].mxu0 %v33
    %v120 = vpop.f32.mrb[0].mxu0
    %v121 = vadd.f32 0.0, %v120
    %v122 = vpop.f32.mrb[0].mxu0
    %123 = vdwg.mxu0
    %v124 = vld [vmem:[%s2] sm:$0xff]
    %v125 = vld [vmem:[%s2 + $0x8] sm:$0xff]
    %v126 = vld [vmem:[%s2 + $0x10] sm:$0xff]
    %v127 = vld [vmem:[%s2 + $0x18] sm:$0xff]
    %v128 = vtanh.pop %v106
    %v129 = vadd.f32 %v128, 1.0
    %131 = vrot.lane.b32.xlu0 %v128, 64
    %v132 = vpop.permute.xlu0 %131
    %v134 = vmul.f32 %v129, %v132
    %v135 = vmul.f32 %v129, 0.0
    %137 = vrot.lane.b32.xlu0 %v135, 32
    %v138 = vpop.permute.xlu0 %137
    %v140 = vadd.f32 %v134, %v138
    %v141 = vmul.f32 %v140, 0.5
    %v142 = vmul.f32 %v129, 0.5
    %v143 = vtanh.pop %v141
    %145 = vrot.lane.b32.xlu0 %v143, 32
    %v146 = vpop.permute.xlu0 %145
    %v148 = vmul.f32 %v142, %v146
    %150 = vrot.lane.b32.xlu0 %v148, 64
    %v151 = vpop.permute.xlu0 %150
    %vm153 = vcmask 257024
    %154 = vst.msk [vmem:[#allocation2] sm:$0xf] %vm153, %v151
    %vm155 = vcmask 261120
    %v156 = vsel %vm155, %v151, 0
    %158 = vmatprep.subr.mxu0 0.0
    %159 = vmatpush1.msra.mxu0 %v124
    %160 = vmatprep.subr.mxu0 0.0
    %161 = vmatpush1.msra.mxu0 %v125
    %162 = vmatprep.subr.mxu0 0.0
    %163 = vmatpush1.msra.mxu0 %v126
    %164 = vmatprep.subr.mxu0 0.0
    %165 = vmatpush1.msra.mxu0 %v127
    %166 = vmatprep.subr.mxu0 0.0
    %167 = vmatpush1.msra.mxu0 0.0
    %168 = vmatprep.subr.mxu0 0.0
    %169 = vmatpush1.msra.mxu0 0.0
    %170 = vmatprep.subr.mxu0 0.0
    %171 = vmatpush1.msra.mxu0 0.0
    %172 = vmatprep.subr.mxu0 0.0
    %173 = vmatpush1.msra.mxu0 0.0
    %174 = vmatprep.subr.mxu0 0.0
    %175 = vmatpush1.msra.mxu0 0.0
    %176 = vmatprep.subr.mxu0 0.0
    %177 = vmatpush1.msra.mxu0 0.0
    %178 = vmatprep.subr.mxu0 0.0
    %179 = vmatpush1.msra.mxu0 0.0
    %180 = vmatprep.subr.mxu0 0.0
    %181 = vmatpush1.msra.mxu0 0.0
    %182 = vmatprep.subr.mxu0 0.0
    %183 = vmatpush1.msra.mxu0 0.0
    %184 = vmatprep.subr.mxu0 0.0
    %185 = vmatpush1.msra.mxu0 0.0
    %186 = vmatprep.subr.mxu0 0.0
    %187 = vmatpush1.msra.mxu0 0.0
    %188 = vmatprep.subr.mxu0 0.0
    %189 = vmatpush1.msra.mxu0 0.0
    %190 = vmatprep.subr.mxu0 0.0
    %191 = vmatpush1.msra.mxu0 0.0
    %192 = vmatprep.subr.mxu0 0.0
    %193 = vmatpush1.msra.mxu0 0.0
    %194 = vmatprep.subr.mxu0 0.0
    %195 = vmatpush1.msra.mxu0 0.0
    %196 = vmatprep.subr.mxu0 0.0
    %197 = vmatpush1.msra.mxu0 0.0
    %198 = vmatprep.subr.mxu0 0.0
    %199 = vmatpush1.msra.mxu0 0.0
    %200 = vmatprep.subr.mxu0 0.0
    %201 = vmatpush1.msra.mxu0 0.0
    %202 = vmatprep.subr.mxu0 0.0
    %203 = vmatpush1.msra.mxu0 0.0
    %204 = vmatprep.subr.mxu0 0.0
    %205 = vmatpush1.msra.mxu0 0.0
    %206 = vmatprep.subr.mxu0 0.0
    %207 = vmatpush1.msra.mxu0 0.0
    %208 = vmatprep.subr.mxu0 0.0
    %209 = vmatpush1.msra.mxu0 0.0
    %210 = vmatprep.subr.mxu0 0.0
    %211 = vmatpush1.msra.mxu0 0.0
    %212 = vmatprep.subr.mxu0 0.0
    %213 = vmatpush1.msra.mxu0 0.0
    %214 = vmatprep.subr.mxu0 0.0
    %215 = vmatpush1.msra.mxu0 0.0
    %216 = vmatprep.subr.mxu0 0.0
    %217 = vmatpush1.msra.mxu0 0.0
    %218 = vmatprep.subr.mxu0 0.0
    %219 = vmatpush1.msra.mxu0 0.0
    %220 = vmatprep.subr.mxu0 0.0
    %221 = vmatpush1.msra.mxu0 0.0
    %222 = vmatprep.mubr.f32.mxu0 0.0
    %223 = vmatmul.mubr.f32.gmra.mrb[0].mxu0 %v156
    %v224 = vpop.f32.mrb[0].mxu0
    %v225 = vadd.f32 0.0, %v224
    %v226 = vpop.f32.mrb[0].mxu0
    %227 = vdwg.mxu0
    %v229 = vrot.slane %v225, 4
    %v231 = vadd.f32 %v106, %v229
    %v232 = vtanh.pop %v231
    %v233 = vadd.f32 %v232, 1.0
    %235 = vrot.lane.b32.xlu0 %v232, 64
    %v236 = vpop.permute.xlu0 %235
    %v238 = vmul.f32 %v233, %v236
    %v240 = vrot.slane %v141, 4
    %241 = vrot.lane.b32.xlu0 %v240, 96
    %v242 = vpop.permute.xlu0 %241
    %v244 = vmul.f32 %v233, %v242
    %246 = vrot.lane.b32.xlu0 %v244, 32
    %v247 = vpop.permute.xlu0 %246
    %v249 = vadd.f32 %v238, %v247
    %v250 = vmul.f32 %v249, 0.5
    %v251 = vmul.f32 %v233, 0.5
    %v252 = vtanh.pop %v250
    %254 = vrot.lane.b32.xlu0 %v252, 32
    %v255 = vpop.permute.xlu0 %254
    %v257 = vmul.f32 %v251, %v255
    %259 = vrot.lane.b32.xlu0 %v257, 64
    %v260 = vpop.permute.xlu0 %259
    %s262 = scalar_lea.vmem [#allocation2], 4
    %vm263 = vcmask 261124
    %264 = vst.msk [vmem:[%s262 - $0x4] sm:$0xf0] %vm263, %v260
    %v265 = vrot.slane %v257, 4
    %266 = vrot.lane.b32.xlu0 %v265, 64
    %v267 = vpop.permute.xlu0 %266
    %v268 = vsel %vm155, %v267, 0
    %270 = vmatprep.subr.mxu0 0.0
    %271 = vmatpush1.msra.mxu0 %v124
    %272 = vmatprep.subr.mxu0 0.0
    %273 = vmatpush1.msra.mxu0 %v125
    %274 = vmatprep.subr.mxu0 0.0
    %275 = vmatpush1.msra.mxu0 %v126
    %276 = vmatprep.subr.mxu0 0.0
    %277 = vmatpush1.msra.mxu0 %v127
    %278 = vmatprep.subr.mxu0 0.0
    %279 = vmatpush1.msra.mxu0 0.0
    %280 = vmatprep.subr.mxu0 0.0
    %281 = vmatpush1.msra.mxu0 0.0
    %282 = vmatprep.subr.mxu0 0.0
    %283 = vmatpush1.msra.mxu0 0.0
    %284 = vmatprep.subr.mxu0 0.0
    %285 = vmatpush1.msra.mxu0 0.0
    %286 = vmatprep.subr.mxu0 0.0
    %287 = vmatpush1.msra.mxu0 0.0
    %288 = vmatprep.subr.mxu0 0.0
    %289 = vmatpush1.msra.mxu0 0.0
    %290 = vmatprep.subr.mxu0 0.0
    %291 = vmatpush1.msra.mxu0 0.0
    %292 = vmatprep.subr.mxu0 0.0
    %293 = vmatpush1.msra.mxu0 0.0
    %294 = vmatprep.subr.mxu0 0.0
    %295 = vmatpush1.msra.mxu0 0.0
    %296 = vmatprep.subr.mxu0 0.0
    %297 = vmatpush1.msra.mxu0 0.0
    %298 = vmatprep.subr.mxu0 0.0
    %299 = vmatpush1.msra.mxu0 0.0
    %300 = vmatprep.subr.mxu0 0.0
    %301 = vmatpush1.msra.mxu0 0.0
    %302 = vmatprep.subr.mxu0 0.0
    %303 = vmatpush1.msra.mxu0 0.0
    %304 = vmatprep.subr.mxu0 0.0
    %305 = vmatpush1.msra.mxu0 0.0
    %306 = vmatprep.subr.mxu0 0.0
    %307 = vmatpush1.msra.mxu0 0.0
    %308 = vmatprep.subr.mxu0 0.0
    %309 = vmatpush1.msra.mxu0 0.0
    %310 = vmatprep.subr.mxu0 0.0
    %311 = vmatpush1.msra.mxu0 0.0
    %312 = vmatprep.subr.mxu0 0.0
    %313 = vmatpush1.msra.mxu0 0.0
    %314 = vmatprep.subr.mxu0 0.0
    %315 = vmatpush1.msra.mxu0 0.0
    %316 = vmatprep.subr.mxu0 0.0
    %317 = vmatpush1.msra.mxu0 0.0
    %318 = vmatprep.subr.mxu0 0.0
    %319 = vmatpush1.msra.mxu0 0.0
    %320 = vmatprep.subr.mxu0 0.0
    %321 = vmatpush1.msra.mxu0 0.0
    %322 = vmatprep.subr.mxu0 0.0
    %323 = vmatpush1.msra.mxu0 0.0
    %324 = vmatprep.subr.mxu0 0.0
    %325 = vmatpush1.msra.mxu0 0.0
    %326 = vmatprep.subr.mxu0 0.0
    %327 = vmatpush1.msra.mxu0 0.0
    %328 = vmatprep.subr.mxu0 0.0
    %329 = vmatpush1.msra.mxu0 0.0
    %330 = vmatprep.subr.mxu0 0.0
    %331 = vmatpush1.msra.mxu0 0.0
    %332 = vmatprep.subr.mxu0 0.0
    %333 = vmatpush1.msra.mxu0 0.0
    %334 = vmatprep.mubr.f32.mxu0 0.0
    %335 = vmatmul.mubr.f32.gmra.mrb[0].mxu0 %v268
    %v336 = vpop.f32.mrb[0].mxu0
    %v337 = vadd.f32 0.0, %v336
    %v338 = vpop.f32.mrb[0].mxu0
    %339 = vdwg.mxu0
    %v340 = vadd.f32 %v111, %v337
    %v341 = vtanh.pop %v340
    %v342 = vadd.f32 %v341, 1.0
    %344 = vrot.lane.b32.xlu0 %v341, 64
    %v345 = vpop.permute.xlu0 %344
    %v347 = vmul.f32 %v342, %v345
    %v349 = vrot.slane %v250, 4
    %350 = vrot.lane.b32.xlu0 %v349, 96
    %v351 = vpop.permute.xlu0 %350
    %v353 = vmul.f32 %v342, %v351
    %355 = vrot.lane.b32.xlu0 %v353, 32
    %v356 = vpop.permute.xlu0 %355
    %v358 = vadd.f32 %v347, %v356
    %v359 = vmul.f32 %v358, 0.5
    %v360 = vmul.f32 %v342, 0.5
    %v361 = vtanh.pop %v359
    %363 = vrot.lane.b32.xlu0 %v361, 32
    %v364 = vpop.permute.xlu0 %363
    %v366 = vmul.f32 %v360, %v364
    %368 = vrot.lane.b32.xlu0 %v366, 64
    %v369 = vpop.permute.xlu0 %368
    %s371 = scalar_lea.vmem [#allocation2], 8
    %372 = vst.msk [vmem:[%s371] sm:$0xf] %vm153, %v369
    %v373 = vsel %vm155, %v369, 0
    %375 = vmatprep.subr.mxu0 0.0
    %376 = vmatpush1.msra.mxu0 %v124
    %377 = vmatprep.subr.mxu0 0.0
    %378 = vmatpush1.msra.mxu0 %v125
    %379 = vmatprep.subr.mxu0 0.0
    %380 = vmatpush1.msra.mxu0 %v126
    %381 = vmatprep.subr.mxu0 0.0
    %382 = vmatpush1.msra.mxu0 %v127
    %383 = vmatprep.subr.mxu0 0.0
    %384 = vmatpush1.msra.mxu0 0.0
    %385 = vmatprep.subr.mxu0 0.0
    %386 = vmatpush1.msra.mxu0 0.0
    %387 = vmatprep.subr.mxu0 0.0
    %388 = vmatpush1.msra.mxu0 0.0
    %389 = vmatprep.subr.mxu0 0.0
    %390 = vmatpush1.msra.mxu0 0.0
    %391 = vmatprep.subr.mxu0 0.0
    %392 = vmatpush1.msra.mxu0 0.0
    %393 = vmatprep.subr.mxu0 0.0
    %394 = vmatpush1.msra.mxu0 0.0
    %395 = vmatprep.subr.mxu0 0.0
    %396 = vmatpush1.msra.mxu0 0.0
    %397 = vmatprep.subr.mxu0 0.0
    %398 = vmatpush1.msra.mxu0 0.0
    %399 = vmatprep.subr.mxu0 0.0
    %400 = vmatpush1.msra.mxu0 0.0
    %401 = vmatprep.subr.mxu0 0.0
    %402 = vmatpush1.msra.mxu0 0.0
    %403 = vmatprep.subr.mxu0 0.0
    %404 = vmatpush1.msra.mxu0 0.0
    %405 = vmatprep.subr.mxu0 0.0
    %406 = vmatpush1.msra.mxu0 0.0
    %407 = vmatprep.subr.mxu0 0.0
    %408 = vmatpush1.msra.mxu0 0.0
    %409 = vmatprep.subr.mxu0 0.0
    %410 = vmatpush1.msra.mxu0 0.0
    %411 = vmatprep.subr.mxu0 0.0
    %412 = vmatpush1.msra.mxu0 0.0
    %413 = vmatprep.subr.mxu0 0.0
    %414 = vmatpush1.msra.mxu0 0.0
    %415 = vmatprep.subr.mxu0 0.0
    %416 = vmatpush1.msra.mxu0 0.0
    %417 = vmatprep.subr.mxu0 0.0
    %418 = vmatpush1.msra.mxu0 0.0
    %419 = vmatprep.subr.mxu0 0.0
    %420 = vmatpush1.msra.mxu0 0.0
    %421 = vmatprep.subr.mxu0 0.0
    %422 = vmatpush1.msra.mxu0 0.0
    %423 = vmatprep.subr.mxu0 0.0
    %424 = vmatpush1.msra.mxu0 0.0
    %425 = vmatprep.subr.mxu0 0.0
    %426 = vmatpush1.msra.mxu0 0.0
    %427 = vmatprep.subr.mxu0 0.0
    %428 = vmatpush1.msra.mxu0 0.0
    %429 = vmatprep.subr.mxu0 0.0
    %430 = vmatpush1.msra.mxu0 0.0
    %431 = vmatprep.subr.mxu0 0.0
    %432 = vmatpush1.msra.mxu0 0.0
    %433 = vmatprep.subr.mxu0 0.0
    %434 = vmatpush1.msra.mxu0 0.0
    %435 = vmatprep.subr.mxu0 0.0
    %436 = vmatpush1.msra.mxu0 0.0
    %437 = vmatprep.subr.mxu0 0.0
    %438 = vmatpush1.msra.mxu0 0.0
    %439 = vmatprep.mubr.f32.mxu0 0.0
    %440 = vmatmul.mubr.f32.gmra.mrb[0].mxu0 %v373
    %v441 = vpop.f32.mrb[0].mxu0
    %v442 = vadd.f32 0.0, %v441
    %v443 = vpop.f32.mrb[0].mxu0
    %444 = vdwg.mxu0
    %v446 = vrot.slane %v442, 4
    %v448 = vadd.f32 %v111, %v446
    %v449 = vtanh.pop %v448
    %v450 = vadd.f32 %v449, 1.0
    %452 = vrot.lane.b32.xlu0 %v449, 64
    %v453 = vpop.permute.xlu0 %452
    %v455 = vmul.f32 %v450, %v453
    %v457 = vrot.slane %v359, 4
    %458 = vrot.lane.b32.xlu0 %v457, 96
    %v459 = vpop.permute.xlu0 %458
    %v461 = vmul.f32 %v450, %v459
    %463 = vrot.lane.b32.xlu0 %v461, 32
    %v464 = vpop.permute.xlu0 %463
    %v466 = vadd.f32 %v455, %v464
    %v467 = vmul.f32 %v466, 0.5
    %v468 = vmul.f32 %v450, 0.5
    %v469 = vtanh.pop %v467
    %471 = vrot.lane.b32.xlu0 %v469, 32
    %v472 = vpop.permute.xlu0 %471
    %v474 = vmul.f32 %v468, %v472
    %476 = vrot.lane.b32.xlu0 %v474, 64
    %v477 = vpop.permute.xlu0 %476
    %s479 = scalar_lea.vmem [#allocation2], 12
    %480 = vst.msk [vmem:[%s479 - $0x4] sm:$0xf0] %vm263, %v477
    %v481 = vrot.slane %v474, 4
    %482 = vrot.lane.b32.xlu0 %v481, 64
    %v483 = vpop.permute.xlu0 %482
    %v484 = vsel %vm155, %v483, 0
    %486 = vmatprep.subr.mxu0 0.0
    %487 = vmatpush1.msra.mxu0 %v124
    %488 = vmatprep.subr.mxu0 0.0
    %489 = vmatpush1.msra.mxu0 %v125
    %490 = vmatprep.subr.mxu0 0.0
    %491 = vmatpush1.msra.mxu0 %v126
    %492 = vmatprep.subr.mxu0 0.0
    %493 = vmatpush1.msra.mxu0 %v127
    %494 = vmatprep.subr.mxu0 0.0
    %495 = vmatpush1.msra.mxu0 0.0
    %496 = vmatprep.subr.mxu0 0.0
    %497 = vmatpush1.msra.mxu0 0.0
    %498 = vmatprep.subr.mxu0 0.0
    %499 = vmatpush1.msra.mxu0 0.0
    %500 = vmatprep.subr.mxu0 0.0
    %501 = vmatpush1.msra.mxu0 0.0
    %502 = vmatprep.subr.mxu0 0.0
    %503 = vmatpush1.msra.mxu0 0.0
    %504 = vmatprep.subr.mxu0 0.0
    %505 = vmatpush1.msra.mxu0 0.0
    %506 = vmatprep.subr.mxu0 0.0
    %507 = vmatpush1.msra.mxu0 0.0
    %508 = vmatprep.subr.mxu0 0.0
    %509 = vmatpush1.msra.mxu0 0.0
    %510 = vmatprep.subr.mxu0 0.0
    %511 = vmatpush1.msra.mxu0 0.0
    %512 = vmatprep.subr.mxu0 0.0
    %513 = vmatpush1.msra.mxu0 0.0
    %514 = vmatprep.subr.mxu0 0.0
    %515 = vmatpush1.msra.mxu0 0.0
    %516 = vmatprep.subr.mxu0 0.0
    %517 = vmatpush1.msra.mxu0 0.0
    %518 = vmatprep.subr.mxu0 0.0
    %519 = vmatpush1.msra.mxu0 0.0
    %520 = vmatprep.subr.mxu0 0.0
    %521 = vmatpush1.msra.mxu0 0.0
    %522 = vmatprep.subr.mxu0 0.0
    %523 = vmatpush1.msra.mxu0 0.0
    %524 = vmatprep.subr.mxu0 0.0
    %525 = vmatpush1.msra.mxu0 0.0
    %526 = vmatprep.subr.mxu0 0.0
    %527 = vmatpush1.msra.mxu0 0.0
    %528 = vmatprep.subr.mxu0 0.0
    %529 = vmatpush1.msra.mxu0 0.0
    %530 = vmatprep.subr.mxu0 0.0
    %531 = vmatpush1.msra.mxu0 0.0
    %532 = vmatprep.subr.mxu0 0.0
    %533 = vmatpush1.msra.mxu0 0.0
    %534 = vmatprep.subr.mxu0 0.0
    %535 = vmatpush1.msra.mxu0 0.0
    %536 = vmatprep.subr.mxu0 0.0
    %537 = vmatpush1.msra.mxu0 0.0
    %538 = vmatprep.subr.mxu0 0.0
    %539 = vmatpush1.msra.mxu0 0.0
    %540 = vmatprep.subr.mxu0 0.0
    %541 = vmatpush1.msra.mxu0 0.0
    %542 = vmatprep.subr.mxu0 0.0
    %543 = vmatpush1.msra.mxu0 0.0
    %544 = vmatprep.subr.mxu0 0.0
    %545 = vmatpush1.msra.mxu0 0.0
    %546 = vmatprep.subr.mxu0 0.0
    %547 = vmatpush1.msra.mxu0 0.0
    %548 = vmatprep.subr.mxu0 0.0
    %549 = vmatpush1.msra.mxu0 0.0
    %550 = vmatprep.mubr.f32.mxu0 0.0
    %551 = vmatmul.mubr.f32.gmra.mrb[0].mxu0 %v484
    %v552 = vpop.f32.mrb[0].mxu0
    %v553 = vadd.f32 0.0, %v552
    %v554 = vpop.f32.mrb[0].mxu0
    %555 = vdwg.mxu0
    %v556 = vadd.f32 %v116, %v553
    %v557 = vtanh.pop %v556
    %v558 = vadd.f32 %v557, 1.0
    %560 = vrot.lane.b32.xlu0 %v557, 64
    %v561 = vpop.permute.xlu0 %560
    %v563 = vmul.f32 %v558, %v561
    %v565 = vrot.slane %v467, 4
    %566 = vrot.lane.b32.xlu0 %v565, 96
    %v567 = vpop.permute.xlu0 %566
    %v569 = vmul.f32 %v558, %v567
    %571 = vrot.lane.b32.xlu0 %v569, 32
    %v572 = vpop.permute.xlu0 %571
    %v574 = vadd.f32 %v563, %v572
    %v575 = vmul.f32 %v574, 0.5
    %v576 = vmul.f32 %v558, 0.5
    %v577 = vtanh.pop %v575
    %579 = vrot.lane.b32.xlu0 %v577, 32
    %v580 = vpop.permute.xlu0 %579
    %v582 = vmul.f32 %v576, %v580
    %584 = vrot.lane.b32.xlu0 %v582, 64
    %v585 = vpop.permute.xlu0 %584
    %s587 = scalar_lea.vmem [#allocation2], 16
    %588 = vst.msk [vmem:[%s587] sm:$0xf] %vm153, %v585
    %v589 = vsel %vm155, %v585, 0
    %591 = vmatprep.subr.mxu0 0.0
    %592 = vmatpush1.msra.mxu0 %v124
    %593 = vmatprep.subr.mxu0 0.0
    %594 = vmatpush1.msra.mxu0 %v125
    %595 = vmatprep.subr.mxu0 0.0
    %596 = vmatpush1.msra.mxu0 %v126
    %597 = vmatprep.subr.mxu0 0.0
    %598 = vmatpush1.msra.mxu0 %v127
    %599 = vmatprep.subr.mxu0 0.0
    %600 = vmatpush1.msra.mxu0 0.0
    %601 = vmatprep.subr.mxu0 0.0
    %602 = vmatpush1.msra.mxu0 0.0
    %603 = vmatprep.subr.mxu0 0.0
    %604 = vmatpush1.msra.mxu0 0.0
    %605 = vmatprep.subr.mxu0 0.0
    %606 = vmatpush1.msra.mxu0 0.0
    %607 = vmatprep.subr.mxu0 0.0
    %608 = vmatpush1.msra.mxu0 0.0
    %609 = vmatprep.subr.mxu0 0.0
    %610 = vmatpush1.msra.mxu0 0.0
    %611 = vmatprep.subr.mxu0 0.0
    %612 = vmatpush1.msra.mxu0 0.0
    %613 = vmatprep.subr.mxu0 0.0
    %614 = vmatpush1.msra.mxu0 0.0
    %615 = vmatprep.subr.mxu0 0.0
    %616 = vmatpush1.msra.mxu0 0.0
    %617 = vmatprep.subr.mxu0 0.0
    %618 = vmatpush1.msra.mxu0 0.0
    %619 = vmatprep.subr.mxu0 0.0
    %620 = vmatpush1.msra.mxu0 0.0
    %621 = vmatprep.subr.mxu0 0.0
    %622 = vmatpush1.msra.mxu0 0.0
    %623 = vmatprep.subr.mxu0 0.0
    %624 = vmatpush1.msra.mxu0 0.0
    %625 = vmatprep.subr.mxu0 0.0
    %626 = vmatpush1.msra.mxu0 0.0
    %627 = vmatprep.subr.mxu0 0.0
    %628 = vmatpush1.msra.mxu0 0.0
    %629 = vmatprep.subr.mxu0 0.0
    %630 = vmatpush1.msra.mxu0 0.0
    %631 = vmatprep.subr.mxu0 0.0
    %632 = vmatpush1.msra.mxu0 0.0
    %633 = vmatprep.subr.mxu0 0.0
    %634 = vmatpush1.msra.mxu0 0.0
    %635 = vmatprep.subr.mxu0 0.0
    %636 = vmatpush1.msra.mxu0 0.0
    %637 = vmatprep.subr.mxu0 0.0
    %638 = vmatpush1.msra.mxu0 0.0
    %639 = vmatprep.subr.mxu0 0.0
    %640 = vmatpush1.msra.mxu0 0.0
    %641 = vmatprep.subr.mxu0 0.0
    %642 = vmatpush1.msra.mxu0 0.0
    %643 = vmatprep.subr.mxu0 0.0
    %644 = vmatpush1.msra.mxu0 0.0
    %645 = vmatprep.subr.mxu0 0.0
    %646 = vmatpush1.msra.mxu0 0.0
    %647 = vmatprep.subr.mxu0 0.0
    %648 = vmatpush1.msra.mxu0 0.0
    %649 = vmatprep.subr.mxu0 0.0
    %650 = vmatpush1.msra.mxu0 0.0
    %651 = vmatprep.subr.mxu0 0.0
    %652 = vmatpush1.msra.mxu0 0.0
    %653 = vmatprep.subr.mxu0 0.0
    %654 = vmatpush1.msra.mxu0 0.0
    %655 = vmatprep.mubr.f32.mxu0 0.0
    %656 = vmatmul.mubr.f32.gmra.mrb[0].mxu0 %v589
    %v657 = vpop.f32.mrb[0].mxu0
    %v658 = vadd.f32 0.0, %v657
    %v659 = vpop.f32.mrb[0].mxu0
    %660 = vdwg.mxu0
    %v662 = vrot.slane %v658, 4
    %v664 = vadd.f32 %v116, %v662
    %v665 = vtanh.pop %v664
    %v666 = vadd.f32 %v665, 1.0
    %668 = vrot.lane.b32.xlu0 %v665, 64
    %v669 = vpop.permute.xlu0 %668
    %v671 = vmul.f32 %v666, %v669
    %v673 = vrot.slane %v575, 4
    %674 = vrot.lane.b32.xlu0 %v673, 96
    %v675 = vpop.permute.xlu0 %674
    %v677 = vmul.f32 %v666, %v675
    %679 = vrot.lane.b32.xlu0 %v677, 32
    %v680 = vpop.permute.xlu0 %679
    %v682 = vadd.f32 %v671, %v680
    %v683 = vmul.f32 %v682, 0.5
    %v684 = vmul.f32 %v666, 0.5
    %v685 = vtanh.pop %v683
    %687 = vrot.lane.b32.xlu0 %v685, 32
    %v688 = vpop.permute.xlu0 %687
    %v690 = vmul.f32 %v684, %v688
    %692 = vrot.lane.b32.xlu0 %v690, 64
    %v693 = vpop.permute.xlu0 %692
    %s695 = scalar_lea.vmem [#allocation2], 20
    %696 = vst.msk [vmem:[%s695 - $0x4] sm:$0xf0] %vm263, %v693
    %v697 = vrot.slane %v690, 4
    %698 = vrot.lane.b32.xlu0 %v697, 64
    %v699 = vpop.permute.xlu0 %698
    %v700 = vsel %vm155, %v699, 0
    %702 = vmatprep.subr.mxu0 0.0
    %703 = vmatpush1.msra.mxu0 %v124
    %704 = vmatprep.subr.mxu0 0.0
    %705 = vmatpush1.msra.mxu0 %v125
    %706 = vmatprep.subr.mxu0 0.0
    %707 = vmatpush1.msra.mxu0 %v126
    %708 = vmatprep.subr.mxu0 0.0
    %709 = vmatpush1.msra.mxu0 %v127
    %710 = vmatprep.subr.mxu0 0.0
    %711 = vmatpush1.msra.mxu0 0.0
    %712 = vmatprep.subr.mxu0 0.0
    %713 = vmatpush1.msra.mxu0 0.0
    %714 = vmatprep.subr.mxu0 0.0
    %715 = vmatpush1.msra.mxu0 0.0
    %716 = vmatprep.subr.mxu0 0.0
    %717 = vmatpush1.msra.mxu0 0.0
    %718 = vmatprep.subr.mxu0 0.0
    %719 = vmatpush1.msra.mxu0 0.0
    %720 = vmatprep.subr.mxu0 0.0
    %721 = vmatpush1.msra.mxu0 0.0
    %722 = vmatprep.subr.mxu0 0.0
    %723 = vmatpush1.msra.mxu0 0.0
    %724 = vmatprep.subr.mxu0 0.0
    %725 = vmatpush1.msra.mxu0 0.0
    %726 = vmatprep.subr.mxu0 0.0
    %727 = vmatpush1.msra.mxu0 0.0
    %728 = vmatprep.subr.mxu0 0.0
    %729 = vmatpush1.msra.mxu0 0.0
    %730 = vmatprep.subr.mxu0 0.0
    %731 = vmatpush1.msra.mxu0 0.0
    %732 = vmatprep.subr.mxu0 0.0
    %733 = vmatpush1.msra.mxu0 0.0
    %734 = vmatprep.subr.mxu0 0.0
    %735 = vmatpush1.msra.mxu0 0.0
    %736 = vmatprep.subr.mxu0 0.0
    %737 = vmatpush1.msra.mxu0 0.0
    %738 = vmatprep.subr.mxu0 0.0
    %739 = vmatpush1.msra.mxu0 0.0
    %740 = vmatprep.subr.mxu0 0.0
    %741 = vmatpush1.msra.mxu0 0.0
    %742 = vmatprep.subr.mxu0 0.0
    %743 = vmatpush1.msra.mxu0 0.0
    %744 = vmatprep.subr.mxu0 0.0
    %745 = vmatpush1.msra.mxu0 0.0
    %746 = vmatprep.subr.mxu0 0.0
    %747 = vmatpush1.msra.mxu0 0.0
    %748 = vmatprep.subr.mxu0 0.0
    %749 = vmatpush1.msra.mxu0 0.0
    %750 = vmatprep.subr.mxu0 0.0
    %751 = vmatpush1.msra.mxu0 0.0
    %752 = vmatprep.subr.mxu0 0.0
    %753 = vmatpush1.msra.mxu0 0.0
    %754 = vmatprep.subr.mxu0 0.0
    %755 = vmatpush1.msra.mxu0 0.0
    %756 = vmatprep.subr.mxu0 0.0
    %757 = vmatpush1.msra.mxu0 0.0
    %758 = vmatprep.subr.mxu0 0.0
    %759 = vmatpush1.msra.mxu0 0.0
    %760 = vmatprep.subr.mxu0 0.0
    %761 = vmatpush1.msra.mxu0 0.0
    %762 = vmatprep.subr.mxu0 0.0
    %763 = vmatpush1.msra.mxu0 0.0
    %764 = vmatprep.subr.mxu0 0.0
    %765 = vmatpush1.msra.mxu0 0.0
    %766 = vmatprep.mubr.f32.mxu0 0.0
    %767 = vmatmul.mubr.f32.gmra.mrb[0].mxu0 %v700
    %v768 = vpop.f32.mrb[0].mxu0
    %v769 = vadd.f32 0.0, %v768
    %v770 = vpop.f32.mrb[0].mxu0
    %771 = vdwg.mxu0
    %v772 = vadd.f32 %v121, %v769
    %v773 = vtanh.pop %v772
    %v774 = vadd.f32 %v773, 1.0
    %776 = vrot.lane.b32.xlu0 %v773, 64
    %v777 = vpop.permute.xlu0 %776
    %v779 = vmul.f32 %v774, %v777
    %v781 = vrot.slane %v683, 4
    %782 = vrot.lane.b32.xlu0 %v781, 96
    %v783 = vpop.permute.xlu0 %782
    %v785 = vmul.f32 %v774, %v783
    %787 = vrot.lane.b32.xlu0 %v785, 32
    %v788 = vpop.permute.xlu0 %787
    %v790 = vadd.f32 %v779, %v788
    %v791 = vmul.f32 %v790, 0.5
    %v792 = vmul.f32 %v774, 0.5
    %v793 = vtanh.pop %v791
    %795 = vrot.lane.b32.xlu0 %v793, 32
    %v796 = vpop.permute.xlu0 %795
    %v798 = vmul.f32 %v792, %v796
    %800 = vrot.lane.b32.xlu0 %v798, 64
    %v801 = vpop.permute.xlu0 %800
    %s803 = scalar_lea.vmem [#allocation2], 24
    %804 = vst.msk [vmem:[%s803] sm:$0xf] %vm153, %v801
    %v805 = vsel %vm155, %v801, 0
    %807 = vmatprep.subr.mxu0 0.0
    %808 = vmatpush1.msra.mxu0 %v124
    %809 = vmatprep.subr.mxu0 0.0
    %810 = vmatpush1.msra.mxu0 %v125
    %811 = vmatprep.subr.mxu0 0.0
    %812 = vmatpush1.msra.mxu0 %v126
    %813 = vmatprep.subr.mxu0 0.0
    %814 = vmatpush1.msra.mxu0 %v127
    %815 = vmatprep.subr.mxu0 0.0
    %816 = vmatpush1.msra.mxu0 0.0
    %817 = vmatprep.subr.mxu0 0.0
    %818 = vmatpush1.msra.mxu0 0.0
    %819 = vmatprep.subr.mxu0 0.0
    %820 = vmatpush1.msra.mxu0 0.0
    %821 = vmatprep.subr.mxu0 0.0
    %822 = vmatpush1.msra.mxu0 0.0
    %823 = vmatprep.subr.mxu0 0.0
    %824 = vmatpush1.msra.mxu0 0.0
    %825 = vmatprep.subr.mxu0 0.0
    %826 = vmatpush1.msra.mxu0 0.0
    %827 = vmatprep.subr.mxu0 0.0
    %828 = vmatpush1.msra.mxu0 0.0
    %829 = vmatprep.subr.mxu0 0.0
    %830 = vmatpush1.msra.mxu0 0.0
    %831 = vmatprep.subr.mxu0 0.0
    %832 = vmatpush1.msra.mxu0 0.0
    %833 = vmatprep.subr.mxu0 0.0
    %834 = vmatpush1.msra.mxu0 0.0
    %835 = vmatprep.subr.mxu0 0.0
    %836 = vmatpush1.msra.mxu0 0.0
    %837 = vmatprep.subr.mxu0 0.0
    %838 = vmatpush1.msra.mxu0 0.0
    %839 = vmatprep.subr.mxu0 0.0
    %840 = vmatpush1.msra.mxu0 0.0
    %841 = vmatprep.subr.mxu0 0.0
    %842 = vmatpush1.msra.mxu0 0.0
    %843 = vmatprep.subr.mxu0 0.0
    %844 = vmatpush1.msra.mxu0 0.0
    %845 = vmatprep.subr.mxu0 0.0
    %846 = vmatpush1.msra.mxu0 0.0
    %847 = vmatprep.subr.mxu0 0.0
    %848 = vmatpush1.msra.mxu0 0.0
    %849 = vmatprep.subr.mxu0 0.0
    %850 = vmatpush1.msra.mxu0 0.0
    %851 = vmatprep.subr.mxu0 0.0
    %852 = vmatpush1.msra.mxu0 0.0
    %853 = vmatprep.subr.mxu0 0.0
    %854 = vmatpush1.msra.mxu0 0.0
    %855 = vmatprep.subr.mxu0 0.0
    %856 = vmatpush1.msra.mxu0 0.0
    %857 = vmatprep.subr.mxu0 0.0
    %858 = vmatpush1.msra.mxu0 0.0
    %859 = vmatprep.subr.mxu0 0.0
    %860 = vmatpush1.msra.mxu0 0.0
    %861 = vmatprep.subr.mxu0 0.0
    %862 = vmatpush1.msra.mxu0 0.0
    %863 = vmatprep.subr.mxu0 0.0
    %864 = vmatpush1.msra.mxu0 0.0
    %865 = vmatprep.subr.mxu0 0.0
    %866 = vmatpush1.msra.mxu0 0.0
    %867 = vmatprep.subr.mxu0 0.0
    %868 = vmatpush1.msra.mxu0 0.0
    %869 = vmatprep.subr.mxu0 0.0
    %870 = vmatpush1.msra.mxu0 0.0
    %871 = vmatprep.mubr.f32.mxu0 0.0
    %872 = vmatmul.mubr.f32.gmra.mrb[0].mxu0 %v805
    %v873 = vpop.f32.mrb[0].mxu0
    %v874 = vadd.f32 0.0, %v873
    %v875 = vpop.f32.mrb[0].mxu0
    %876 = vdwg.mxu0
    %v878 = vrot.slane %v874, 4
    %v880 = vadd.f32 %v121, %v878
    %v881 = vtanh.pop %v880
    %v882 = vadd.f32 %v881, 1.0
    %884 = vrot.lane.b32.xlu0 %v881, 64
    %v885 = vpop.permute.xlu0 %884
    %v887 = vmul.f32 %v882, %v885
    %v889 = vrot.slane %v791, 4
    %890 = vrot.lane.b32.xlu0 %v889, 96
    %v891 = vpop.permute.xlu0 %890
    %v893 = vmul.f32 %v882, %v891
    %895 = vrot.lane.b32.xlu0 %v893, 32
    %v896 = vpop.permute.xlu0 %895
    %v898 = vadd.f32 %v887, %v896
    %v899 = vmul.f32 %v898, 0.5
    %v900 = vmul.f32 %v882, 0.5
    %v901 = vtanh.pop %v899
    %903 = vrot.lane.b32.xlu0 %v901, 32
    %v904 = vpop.permute.xlu0 %903
    %v906 = vmul.f32 %v900, %v904
    %908 = vrot.lane.b32.xlu0 %v906, 64
    %v909 = vpop.permute.xlu0 %908
    %s911 = scalar_lea.vmem [#allocation2], 28
    %912 = vst.msk [vmem:[%s911 - $0x4] sm:$0xf0] %vm263, %v909
    // Predicated region
    $region14: #{tpu_custom_call.1} parent=1 // pred_check
      _
    $region15: #{tpu_custom_call.1} parent=1 // pred_check_branch
      %914 = sbr.rel (0) target = $region17
    $region16: #{tpu_custom_call.1} parent=1 // pred_region
      %s916 = ssub.s32 512, 512
      %917 = vsyncadd [#allocation3], %s916
      %s918 = sshll.u32 [#allocation2], 4
      %s919 = int_to_ptr.vmem [resolvable:$true] %s918
      %924 = dma.vmem_to_hbm [thread:$0]  %s919, 512, %s3, [#allocation3], 64, 64, 4
    $region17: #{tpu_custom_call.1} parent=1 // pred_fallthru
      _
    // Predicated region
    $region18: #{tpu_custom_call.1} parent=1 // pred_check
      _
    $region19: #{tpu_custom_call.1} parent=1 // pred_check_branch
      %926 = sbr.rel (0) target = $region21
    $region20: #{tpu_custom_call.1} parent=1 // pred_region
      %927 = dma.done [#allocation3], 512
    $region21: #{tpu_custom_call.1} parent=1 // pred_fallthru
      _
    %928 = vsyncpa [#allocation3], 1

</llo_original>
